<compile_context>
chip_gen: v7x
topology: tpu7x:2x2x1
jax: 0.10.0
libtpu: 0.0.40
codegen_flags: <defaults>
</compile_context>

<pallas_src>
import jax
import jax.numpy as jnp
from jax.experimental import pallas as pl
from jax.experimental.pallas import tpu as pltpu


# ----------------------------------------------------------------------------
# Kernels
# ----------------------------------------------------------------------------
def _pooler_kernel_single(x_ref, w_ref, b_ref, o_ref):
    # Single reduction step (tk == H_in): no scratch, no init/finalize.
    acc = jnp.dot(x_ref[...], w_ref[...], preferred_element_type=jnp.float32)
    o_ref[...] = jnp.tanh(acc + b_ref[...]).astype(o_ref.dtype)


def _pooler_kernel_multi(x_ref, w_ref, b_ref, o_ref, acc_ref):
    # x_ref: (tb, tk), w_ref: (tk, tn), b_ref: (1, tn) f32, acc_ref: (tb, tn) f32
    k = pl.program_id(2)

    @pl.when(k == 0)
    def _init():
        # Fold the bias into the accumulator init (saves a zero-fill store and
        # a separate bias add in the epilogue).
        acc_ref[...] = jnp.broadcast_to(b_ref[...], acc_ref.shape)

    acc_ref[...] += jnp.dot(x_ref[...], w_ref[...],
                            preferred_element_type=jnp.float32)

    @pl.when(k == pl.num_programs(2) - 1)
    def _finalize():
        o_ref[...] = jnp.tanh(acc_ref[...]).astype(o_ref.dtype)


# ----------------------------------------------------------------------------
# Tile selection
# ----------------------------------------------------------------------------
_W_VMEM_BUDGET = 32 << 20  # budget for (up to triple-buffered) weight tiles


def _pick_tn(h_out):
    """Prefer big lane-dense tiles, but keep >= 2 n-tiles when possible so the
    'parallel' n axis can be split across v7x's two TensorCores."""
    for c in (1024, 512, 256, 128):
        if h_out % c == 0 and h_out // c >= 2:
            return c
    for c in (1024, 512, 256, 128):
        if h_out % c == 0:
            return c
    return h_out  # full-dimension block is always legal


def _pick_tk(h_in, tn, w_itemsize):
    """Full reduction per step unless the weight tiles would blow the VMEM
    budget (checked conservatively at 3 buffers)."""
    if 3 * h_in * tn * w_itemsize <= _W_VMEM_BUDGET:
        return h_in
    for c in (4096, 2048, 1024, 512, 256, 128):
        if h_in % c == 0 and 3 * c * tn * w_itemsize <= _W_VMEM_BUDGET:
            return c
    return h_in


# ----------------------------------------------------------------------------
# Wrapper
# ----------------------------------------------------------------------------
def bert_pooler(hidden_states, weight, bias, *,
                block_b=None, block_n=None, block_k=None):
    """BertPooler forward: tanh(hidden_states[:, 0, :] @ weight + bias).

    hidden_states: [B, S, H_in]; weight: [H_in, H_out] (in x out); bias: [H_out].
    Output dtype follows hidden_states.
    """
    x = hidden_states[:, 0, :]                       # tiny O(B*H) slice
    B, H_in = x.shape
    H_out = weight.shape[1]
    out_dtype = hidden_states.dtype

    # Cast activations to the weight dtype ONCE in the wrapper (bf16 weight
    # streaming path): halves x DMA bytes, no per-step VPU casts in-kernel.
    if x.dtype != weight.dtype:
        x = x.astype(weight.dtype)
    bias2d = bias.reshape(1, H_out).astype(jnp.float32)

    x_item = jnp.dtype(x.dtype).itemsize
    w_item = jnp.dtype(weight.dtype).itemsize
    out_item = jnp.dtype(out_dtype).itemsize

    # Defaults: weight streamed exactly once (tb = B), full reduction (tk = H_in).
    tb = block_b if block_b is not None else B
    tn = block_n if block_n is not None else _pick_tn(H_out)
    tk = block_k if block_k is not None else _pick_tk(H_in, tn, w_item)
    assert B % tb == 0 and H_out % tn == 0 and H_in % tk == 0, \
        "block sizes must evenly divide (B, H_out, H_in)"

    nb, nn, nk = B // tb, H_out // tn, H_in // tk
    grid = (nb, nn, nk)
    total_steps = nb * nn * nk

    # Triple-buffer the weight stream when there are >= 3 grid steps
    # (biggest win on v5e: lowest HBM BW, almost nothing to hide DMA behind).
    n_wbufs = 3 if total_steps >= 3 else 2
    if n_wbufs == 3:
        w_spec = pl.BlockSpec((tk, tn), lambda b, n, k: (k, n),
                              pipeline_mode=pl.Buffered(3))
    else:
        w_spec = pl.BlockSpec((tk, tn), lambda b, n, k: (k, n))

    # VMEM footprint -> explicit limit (clamped to 64 MiB: safe on v7x too).
    vmem_est = (2 * tb * tk * x_item                  # double-buffered x
                + n_wbufs * tk * tn * w_item          # weight buffers
                + 2 * tn * 4                          # bias
                + 2 * tb * tn * out_item              # output
                + (tb * tn * 4 if nk > 1 else 0))     # f32 accumulator scratch
    vmem_limit = int(min(64 << 20, max(32 << 20, int(vmem_est * 1.25))))

    # Actual HBM traffic: weight re-read per b-tile, x re-read per n-tile when
    # the reduction axis is split (with tk == H_in the x block index is
    # constant across n, so it is fetched once per b-tile).
    w_hbm = weight.size * w_item * nb
    x_hbm = x.size * x_item * (nn if nk > 1 else 1)
    bias_hbm = H_out * 4 * nb
    out_hbm = B * H_out * out_item
    cost = pl.CostEstimate(
        flops=2 * B * H_in * H_out,
        transcendentals=B * H_out,
        bytes_accessed=int(w_hbm + x_hbm + bias_hbm + out_hbm),
    )

    if nk == 1:
        kernel = _pooler_kernel_single
        scratch = []
    else:
        kernel = _pooler_kernel_multi
        scratch = [pltpu.VMEM((tb, tn), jnp.float32)]

    return pl.pallas_call(
        kernel,
        out_shape=jax.ShapeDtypeStruct((B, H_out), out_dtype),
        grid_spec=pltpu.PrefetchScalarGridSpec(
            num_scalar_prefetch=0,
            grid=grid,
            in_specs=[
                pl.BlockSpec((tb, tk), lambda b, n, k: (b, k)),   # activations
                w_spec,                                           # weight stream
                pl.BlockSpec((1, tn), lambda b, n, k: (0, n)),    # bias
            ],
            out_specs=pl.BlockSpec((tb, tn), lambda b, n, k: (b, n)),
            scratch_shapes=scratch,
        ),
        compiler_params=pltpu.CompilerParams(
            dimension_semantics=("parallel", "parallel", "arbitrary"),
            vmem_limit_bytes=vmem_limit),
        cost_estimate=cost,
    )(x, weight, bias2d)


def bert_pooler_ref(hidden_states, weight, bias):
    x = hidden_states[:, 0, :].astype(jnp.float32)
    y = x @ weight.astype(jnp.float32) + bias.astype(jnp.float32)[None, :]
    return jnp.tanh(y).astype(hidden_states.dtype)


if __name__ == "__main__":
    B, S, H = 8, 8, 256
    key = jax.random.PRNGKey(0)
    k_x, k_w, k_b = jax.random.split(key, 3)

    hidden_states = jax.random.normal(k_x, (B, S, H), dtype=jnp.float32)
    # Deterministic synthetic parameters (not a checkpoint).
    weight = (jax.random.normal(k_w, (H, H), dtype=jnp.float32)
              / jnp.sqrt(jnp.float32(H)))
    bias = jax.random.normal(k_b, (H,), dtype=jnp.float32) * 0.01

    ref = bert_pooler_ref(hidden_states, weight, bias)

    # 1) Auto-selected tiles: tb=B, tk=H_in -> single-k kernel, no scratch,
    #    grid (1, 2, 1) with two parallel n-tiles (v7x megacore friendly).
    out_auto = jax.block_until_ready(bert_pooler(hidden_states, weight, bias))
    assert out_auto.shape == (B, H)
    assert jnp.allclose(out_auto, ref, atol=1e-4, rtol=1e-4)

    # 2) Split reduction: grid (1, 2, 2) >= 3 steps -> exercises the
    #    bias-initialized accumulator kernel AND the Buffered(3) weight stream.
    out_tiled = jax.block_until_ready(
        bert_pooler(hidden_states, weight, bias, block_n=128, block_k=128))
    assert jnp.allclose(out_tiled, ref, atol=1e-4, rtol=1e-4)

    # 3) bf16 weight streaming (halves weight + activation HBM bytes; f32
    #    accumulate).  Precision decision, hence looser tolerance.
    out_bf16 = jax.block_until_ready(
        bert_pooler(hidden_states, weight.astype(jnp.bfloat16), bias))
    assert jnp.allclose(out_bf16, ref, atol=5e-2, rtol=5e-2)

    print("KERNEL_OK")
</pallas_src>

<mosaic_0001>
module attributes {stable_mosaic.version = 11 : i64} {
  func.func @_pooler_kernel_single(%arg0: i32, %arg1: i32, %arg2: i32, %arg3: memref<8x256xf32, #tpu.memory_space<vmem>>, %arg4: memref<256x128xf32, #tpu.memory_space<vmem>>, %arg5: memref<1x128xf32, #tpu.memory_space<vmem>>, %arg6: memref<8x128xf32, #tpu.memory_space<vmem>>) attributes {dimension_semantics = [#tpu.dimension_semantics<parallel>, #tpu.dimension_semantics<parallel>, #tpu.dimension_semantics<arbitrary>], iteration_bounds = array<i64: 1, 2, 1>, scalar_prefetch = 0 : i64, scratch_operands = 0 : i64, tpu.core_type = #tpu.core_type<tc>, window_params = [{transform_indices = @transform_0, window_bounds = array<i64: 8, 256>}, {transform_indices = @transform_1, window_bounds = array<i64: 256, 128>}, {transform_indices = @transform_2, window_bounds = array<i64: 1, 128>}, {transform_indices = @transform_3, window_bounds = array<i64: 8, 128>}]} {
    %c0 = arith.constant 0 : index
    %c0_0 = arith.constant 0 : index
    %0 = vector.load %arg3[%c0, %c0_0] : memref<8x256xf32, #tpu.memory_space<vmem>>, vector<8x256xf32>
    %c0_1 = arith.constant 0 : index
    %c0_2 = arith.constant 0 : index
    %1 = vector.load %arg4[%c0_1, %c0_2] : memref<256x128xf32, #tpu.memory_space<vmem>>, vector<256x128xf32>
    %cst = arith.constant dense<0.000000e+00> : vector<8x128xf32>
    %2 = tpu.matmul %0, %1, %cst {dimension_numbers = #tpu.dot_dimension_numbers<[1], [0], [0], [1], [0, 0, 1, 1], [], []>} : vector<8x256xf32>, vector<256x128xf32>, vector<8x128xf32> -> vector<8x128xf32>
    %c0_3 = arith.constant 0 : index
    %c0_4 = arith.constant 0 : index
    %3 = vector.load %arg5[%c0_3, %c0_4] : memref<1x128xf32, #tpu.memory_space<vmem>>, vector<1x128xf32>
    %4 = vector.broadcast %3 : vector<1x128xf32> to vector<8x128xf32>
    %5 = arith.addf %2, %4 : vector<8x128xf32>
    %6 = math.tanh %5 : vector<8x128xf32>
    %c0_5 = arith.constant 0 : index
    %c0_6 = arith.constant 0 : index
    %7 = vector.load %arg6[%c0_5, %c0_6] : memref<8x128xf32, #tpu.memory_space<vmem>>, vector<8x128xf32>
    tpu.vector_store %arg6[%c0_5, %c0_6], %6 {strides = array<i32>} : memref<8x128xf32, #tpu.memory_space<vmem>>, vector<8x128xf32>,
    return
  }
  func.func @transform_0(%arg0: i32, %arg1: i32, %arg2: i32) -> (i32, i32) {
    %c0_i32 = arith.constant 0 : i32
    return %arg0, %arg2 : i32, i32
  }
  func.func @transform_1(%arg0: i32, %arg1: i32, %arg2: i32) -> (i32, i32) {
    %c0_i32 = arith.constant 0 : i32
    return %arg2, %arg1 : i32, i32
  }
  func.func @transform_2(%arg0: i32, %arg1: i32, %arg2: i32) -> (i32, i32) {
    %c0_i32 = arith.constant 0 : i32
    %c0_i32_0 = arith.constant 0 : i32
    return %c0_i32, %arg1 : i32, i32
  }
  func.func @transform_3(%arg0: i32, %arg1: i32, %arg2: i32) -> (i32, i32) {
    %c0_i32 = arith.constant 0 : i32
    return %arg0, %arg1 : i32, i32
  }
}

</mosaic_0001>

<llo_original>
// kernel: tpu_custom_call.1
$region0: #{tpu_custom_call.1}
  #allocation0 [shape = 'u32[]', space=smem, size = 0x4, offset = 0x4, fixed_abs, tag = 'smem constant byte address 0x4 - core index']
  #allocation1 [shape = 'u32[144,128]{1,0:T(1,128)}', space=vmem, size = 0x12000, scoped, tag = 'internal scratch']
  %s0 = inlined_call_operand.hbm [shape: f32[8,256], index: 0, kind: input, shape index: {}]
  %s1 = inlined_call_operand.hbm [shape: f32[256,256], index: 1, kind: input, shape index: {}]
  %s2 = inlined_call_operand.vmem [shape: f32[1,256], index: 2, kind: input, shape index: {}]
  %s3 = inlined_call_operand.hbm [shape: f32[8,256], index: 3, kind: output, shape index: {}]
  %s4 = sld [smem:[#allocation0]]
  $region53: #{tpu_custom_call.1} parent=0
    _
  %s6 = ssub.s32 1, %s4
  %s7 = scalar_select 0, %s6, %s4
  $region1: #{tpu_custom_call.1} parent=0
    #allocation2 [shape = 'u8[8192]{0}', space=vmem, size = 0x2000, scoped, tag = 'input window, operand 0, single buffered']
    #allocation3 [shape = 's32[2]{0}', space=sflag, size = 0x8, scoped, tag = 'scoped memory for tpu_custom_call.1']
    #allocation4 [shape = 's32[2]{0}', space=sflag, size = 0x8, scoped, tag = 'scoped memory for tpu_custom_call.1']
    #allocation5 [shape = 'u8[262144]{0}', space=vmem, size = 0x40000, scoped, tag = 'input window, operand 1']
    #allocation6 [shape = 's32[2]{0}', space=sflag, size = 0x8, scoped, tag = 'scoped memory for tpu_custom_call.1']
    #allocation7 [shape = 'u8[8192]{0}', space=vmem, size = 0x2000, scoped, tag = 'output window, operand 0']
    %8 = vsyncpa [#allocation3], 0
    %9 = vsyncpa [#allocation6], 0
    %s10 = scalar_lea.sflag [#allocation6], 1
    %11 = vsyncpa %s10, 0
    %12 = vsyncpa [#allocation4], 0
    %s13 = scalar_lea.sflag [#allocation4], 1
    %14 = vsyncpa %s13, 0
    loop: start=0, step=1, limit=4
    $region2: #{tpu_custom_call.1} parent=1 // loop_pre_header
      _
    $region3: #{tpu_custom_call.1} parent=1 // loop_header
      %s16 = sphi 0, %s20
      %p17 = scmp.ge.s32.totalorder %s16, 4
      %s23 = sphi 0, %s42
      %s24 = sphi 0, %s38
      %s25 = sphi 0, %s34
      %s26 = sphi 0, %s23
      %s27 = sphi 0, %s24
      %s28 = sphi 0, %s25
      %s29 = sphi 0, %s26
      %s30 = sphi 0, %s27
      %s31 = sphi 0, %s28
      %s47 = sphi 0, %s49
      %s50 = sphi 0, %s47
      %s51 = sphi 0, %s50
      %s67 = sphi 0, %s51
      %s75 = sphi 0, %s77
      %s78 = sphi 0, %s75
      %s79 = sphi 0, %s78
      %s95 = sphi 0, %s79
      %s101 = sphi 0, %s103
      %s104 = sphi 0, %s101
      %s105 = sphi 0, %s104
      %s121 = sphi 0, %s105
      %s129 = sphi 0, %s131
      %s132 = sphi 0, %s129
      %s133 = sphi 0, %s132
      %s149 = sphi 0, %s133
    $region4: #{tpu_custom_call.1} parent=1 // loop_header_branch
      %19 = sbr.rel (%p17) target = $region8
    $region5: #{tpu_custom_call.1} parent=1 // loop_body
      %s21 = ssub.s32 %s16, 1
      %s22 = ssub.s32 %s16, 2
      %s32 = sadd.s32 1, %s25
      %p33 = scmp.ge.s32.totalorder %s32, 1
      %s34 = scalar_select %p33, 0, %s32
      %s35 = sadd.s32 1, %s24
      %s36 = scalar_select %p33, %s35, %s24
      %p37 = scmp.ge.s32.totalorder %s36, 2
      %s38 = scalar_select %p37, 0, %s36
      %s39 = sadd.s32 1, %s23
      %s40 = scalar_select %p37, %s39, %s23
      %p41 = scmp.ge.s32.totalorder %s40, 1
      %s42 = scalar_select %p41, 0, %s40
      %s43 = ssub.s32 %s23, %s42
      %s44 = ssub.s32 %s25, %s34
      %s45 = sor.u32 %s43, %s44
      %p46 = scmp.eq.s32.totalorder %s45, 0
      %s48 = sadd.s32 %s47, 1
      %s49 = scalar_select %p46, %s47, %s48
      %p52 = pneg %p46
      %p53 = scmp.eq.s32.totalorder %s16, 1
      %p54 = por %p52, %p53
      %p55 = scmp.ne.s32.totalorder %s47, %s50
      %p56 = scmp.eq.s32.totalorder %s16, 0
      %p57 = por %p55, %p56
      %p58 = scmp.ne.s32.totalorder %s47, %s50
      %p59 = scmp.eq.s32.totalorder %s21, 1
      %p60 = por %p58, %p59
      %p61 = scmp.ne.s32.totalorder %s50, %s51
      %p62 = scmp.eq.s32.totalorder %s21, 0
      %p63 = por %p61, %p62
      %p64 = scmp.ne.s32.totalorder %s50, %s51
      %p65 = scmp.eq.s32.totalorder %s22, 1
      %p66 = por %p64, %p65
      %p68 = scmp.ne.s32.totalorder %s51, %s67
      %p69 = scmp.eq.s32.totalorder %s22, 0
      %p70 = por %p68, %p69
      %s71 = ssub.s32 %s25, %s34
      %s72 = ssub.s32 %s24, %s38
      %s73 = sor.u32 %s71, %s72
      %p74 = scmp.eq.s32.totalorder %s73, 0
      %s76 = sadd.s32 %s75, 1
      %s77 = scalar_select %p74, %s75, %s76
      %p80 = pneg %p74
      %p81 = scmp.eq.s32.totalorder %s16, 1
      %p82 = por %p80, %p81
      %p83 = scmp.ne.s32.totalorder %s75, %s78
      %p84 = scmp.eq.s32.totalorder %s16, 0
      %p85 = por %p83, %p84
      %p86 = scmp.ne.s32.totalorder %s75, %s78
      %p87 = scmp.eq.s32.totalorder %s21, 1
      %p88 = por %p86, %p87
      %p89 = scmp.ne.s32.totalorder %s78, %s79
      %p90 = scmp.eq.s32.totalorder %s21, 0
      %p91 = por %p89, %p90
      %p92 = scmp.ne.s32.totalorder %s78, %s79
      %p93 = scmp.eq.s32.totalorder %s22, 1
      %p94 = por %p92, %p93
      %p96 = scmp.ne.s32.totalorder %s79, %s95
      %p97 = scmp.eq.s32.totalorder %s22, 0
      %p98 = por %p96, %p97
      %s99 = ssub.s32 %s24, %s38
      %p100 = scmp.eq.s32.totalorder %s99, 0
      %s102 = sadd.s32 %s101, 1
      %s103 = scalar_select %p100, %s101, %s102
      %p106 = pneg %p100
      %p107 = scmp.eq.s32.totalorder %s16, 1
      %p108 = por %p106, %p107
      %p109 = scmp.ne.s32.totalorder %s101, %s104
      %p110 = scmp.eq.s32.totalorder %s16, 0
      %p111 = por %p109, %p110
      %p112 = scmp.ne.s32.totalorder %s101, %s104
      %p113 = scmp.eq.s32.totalorder %s21, 1
      %p114 = por %p112, %p113
      %p115 = scmp.ne.s32.totalorder %s104, %s105
      %p116 = scmp.eq.s32.totalorder %s21, 0
      %p117 = por %p115, %p116
      %p118 = scmp.ne.s32.totalorder %s104, %s105
      %p119 = scmp.eq.s32.totalorder %s22, 1
      %p120 = por %p118, %p119
      %p122 = scmp.ne.s32.totalorder %s105, %s121
      %p123 = scmp.eq.s32.totalorder %s22, 0
      %p124 = por %p122, %p123
      %s125 = ssub.s32 %s23, %s42
      %s126 = ssub.s32 %s24, %s38
      %s127 = sor.u32 %s125, %s126
      %p128 = scmp.eq.s32.totalorder %s127, 0
      %s130 = sadd.s32 %s129, 1
      %s131 = scalar_select %p128, %s129, %s130
      %p134 = pneg %p128
      %p135 = scmp.eq.s32.totalorder %s16, 1
      %p136 = por %p134, %p135
      %p137 = scmp.ne.s32.totalorder %s129, %s132
      %p138 = scmp.eq.s32.totalorder %s16, 0
      %p139 = por %p137, %p138
      %p140 = scmp.ne.s32.totalorder %s129, %s132
      %p141 = scmp.eq.s32.totalorder %s21, 1
      %p142 = por %p140, %p141
      %p143 = scmp.ne.s32.totalorder %s132, %s133
      %p144 = scmp.eq.s32.totalorder %s21, 0
      %p145 = por %p143, %p144
      %p146 = scmp.ne.s32.totalorder %s132, %s133
      %p147 = scmp.eq.s32.totalorder %s22, 1
      %p148 = por %p146, %p147
      %p150 = scmp.ne.s32.totalorder %s133, %s149
      %p151 = scmp.eq.s32.totalorder %s22, 0
      %p152 = por %p150, %p151
      %p153 = scmp.le.s32.totalorder 1, %s16
      %p154 = scmp.lt.s32.totalorder %s16, 3
      %p155 = pnand %p153, %p154
      %p156 = pneg %p155
      // Predicated region
      $region9: #{tpu_custom_call.1} parent=5 // pred_check
        _
      $region10: #{tpu_custom_call.1} parent=5 // pred_check_branch
        %158 = sbr.rel (%p155) target = $region12
      $region11: #{tpu_custom_call.1} parent=5 // pred_region
        %s159 = ssub.s32 %s16, 1
        // Predicated region
        $region13: #{tpu_custom_call.1} parent=11 // pred_check
          %p160 = pneg %p63
        $region14: #{tpu_custom_call.1} parent=11 // pred_check_branch
          %162 = sbr.rel (%p160) target = $region16
        $region15: #{tpu_custom_call.1} parent=11 // pred_region
          %s163 = smul.u32 2, %s28
          %s165 = ssub.s32 256, 256
          %166 = vsyncadd [#allocation3], %s165
          %s167 = smul.addr %s26, 2
          %s168 = sadd.s32 %s163, %s167
          %s169 = smul.addr %s168, 128
          %s170 = scalar_lea.hbm %s0, %s169
          %s172 = sshll.u32 [#allocation2], 4
          %s173 = int_to_ptr.vmem [resolvable:$true] %s172
          %175 = dma.hbm_to_vmem [thread:$0]  %s170, 256, %s173, [#allocation3]
        $region16: #{tpu_custom_call.1} parent=11 // pred_fallthru
          _
      $region12: #{tpu_custom_call.1} parent=5 // pred_fallthru
        _
      %p176 = scmp.lt.s32.totalorder %s16, 2
      // Predicated region
      $region17: #{tpu_custom_call.1} parent=5 // pred_check
        %p177 = pneg %p176
      $region18: #{tpu_custom_call.1} parent=5 // pred_check_branch
        %179 = sbr.rel (%p177) target = $region20
      $region19: #{tpu_custom_call.1} parent=5 // pred_region
        // Predicated region
        $region21: #{tpu_custom_call.1} parent=19 // pred_check
          %p180 = pneg %p85
        $region22: #{tpu_custom_call.1} parent=19 // pred_check_branch
          %182 = sbr.rel (%p180) target = $region24
        $region23: #{tpu_custom_call.1} parent=19 // pred_region
          %s183 = sand.u32 %s75, 1
          %s184 = scalar_lea.sflag [#allocation6], %s183
          %s185 = sand.u32 %s75, 1
          %s186 = smul.addr %s185, 256
          %s187 = scalar_lea.vmem [#allocation5], %s186
          %s188 = smul.u32 32, %s25
          %s190 = ssub.s32 4096, 4096
          %191 = vsyncadd %s184, %s190
          %s192 = smul.addr %s188, 2
          %s193 = sadd.s32 %s24, %s192
          %s194 = smul.addr %s193, 128
          %s195 = scalar_lea.hbm %s1, %s194
          %s196 = sshll.u32 %s187, 4
          %s197 = int_to_ptr.vmem [resolvable:$true] %s196
          %202 = dma.hbm_to_vmem [thread:$0]  %s195, 4096, %s197, %s184, 256, 128, 8
        $region24: #{tpu_custom_call.1} parent=19 // pred_fallthru
          _
        // Predicated region
        $region25: #{tpu_custom_call.1} parent=19 // pred_check
          %p203 = pneg %p111
        $region26: #{tpu_custom_call.1} parent=19 // pred_check_branch
          %205 = sbr.rel (%p203) target = $region28
        $region27: #{tpu_custom_call.1} parent=19 // pred_region
          %p206 = scmp.lt.s32.totalorder %s24, 1
          %s207 = scalar_select %p206, %s24, 1
          %s208 = scalar_lea.vmem %s2, %s207
        $region28: #{tpu_custom_call.1} parent=19 // pred_fallthru
          _
      $region20: #{tpu_custom_call.1} parent=5 // pred_fallthru
        _
      %p209 = scmp.le.s32.totalorder 1, %s16
      %p210 = scmp.lt.s32.totalorder %s16, 3
      %p211 = pnand %p209, %p210
      %p212 = pneg %p211
      // Predicated region
      $region29: #{tpu_custom_call.1} parent=5 // pred_check
        _
      $region30: #{tpu_custom_call.1} parent=5 // pred_check_branch
        %214 = sbr.rel (%p211) target = $region32
      $region31: #{tpu_custom_call.1} parent=5 // pred_region
        %s215 = ssub.s32 %s16, 1
        // Predicated region
        $region33: #{tpu_custom_call.1} parent=31 // pred_check
          %p216 = pneg %p63
        $region34: #{tpu_custom_call.1} parent=31 // pred_check_branch
          %218 = sbr.rel (%p216) target = $region36
        $region35: #{tpu_custom_call.1} parent=31 // pred_region
          %219 = dma.done [#allocation3], 256
        $region36: #{tpu_custom_call.1} parent=31 // pred_fallthru
          _
        %s220 = sand.u32 %s78, 1
        %s221 = scalar_lea.sflag [#allocation6], %s220
        %s222 = sand.u32 %s78, 1
        %s223 = smul.addr %s222, 256
        %s224 = scalar_lea.vmem [#allocation5], %s223
        // Predicated region
        $region37: #{tpu_custom_call.1} parent=31 // pred_check
          %p225 = pneg %p91
        $region38: #{tpu_custom_call.1} parent=31 // pred_check_branch
          %227 = sbr.rel (%p225) target = $region40
        $region39: #{tpu_custom_call.1} parent=31 // pred_region
          %228 = dma.done %s221, 4096
        $region40: #{tpu_custom_call.1} parent=31 // pred_fallthru
          _
        %p229 = pneg %p63
        %p230 = pneg %p60
        %s231 = sand.u32 %s78, 1
        %s232 = scalar_lea.sflag [#allocation6], %s231
        %s233 = sand.u32 %s78, 1
        %s234 = smul.addr %s233, 256
        %s235 = scalar_lea.vmem [#allocation5], %s234
        %p236 = pneg %p91
        %p237 = pneg %p88
        %p238 = scmp.lt.s32.totalorder %s27, 1
        %s239 = scalar_select %p238, %s27, 1
        %s240 = scalar_lea.vmem %s2, %s239
        %p241 = pneg %p117
        %p242 = pneg %p114
        %p243 = pneg %p145
        %p244 = pneg %p142
        %s245 = sand.u32 %s132, 1
        %s246 = scalar_lea.sflag [#allocation4], %s245
        %s247 = sand.u32 %s132, 1
        %s248 = smul.addr %s247, 8
        %s249 = scalar_lea.vmem [#allocation7], %s248
        %s250 = smul.u32 2, %s28
        %s251 = smul.u32 32, %s28
        %p252 = scmp.lt.s32.totalorder %s27, 1
        %s253 = scalar_select %p252, %s27, 1
        %s254 = scalar_lea.vmem %s2, %s253
        %v255 = vld [vmem:[#allocation2] sm:$0xff]
        %v256 = vld [vmem:[#allocation2 + $0x8] sm:$0xff]
        %v257 = vld [vmem:[%s224] sm:$0xff]
        %v258 = vld [vmem:[%s224 + $0x8] sm:$0xff]
        %v259 = vld [vmem:[%s224 + $0x10] sm:$0xff]
        %v260 = vld [vmem:[%s224 + $0x18] sm:$0xff]
        %v261 = vld [vmem:[%s224 + $0x20] sm:$0xff]
        %v262 = vld [vmem:[%s224 + $0x28] sm:$0xff]
        %v263 = vld [vmem:[%s224 + $0x30] sm:$0xff]
        %v264 = vld [vmem:[%s224 + $0x38] sm:$0xff]
        %v265 = vld [vmem:[%s224 + $0x40] sm:$0xff]
        %v266 = vld [vmem:[%s224 + $0x48] sm:$0xff]
        %v267 = vld [vmem:[%s224 + $0x50] sm:$0xff]
        %v268 = vld [vmem:[%s224 + $0x58] sm:$0xff]
        %v269 = vld [vmem:[%s224 + $0x60] sm:$0xff]
        %v270 = vld [vmem:[%s224 + $0x68] sm:$0xff]
        %v271 = vld [vmem:[%s224 + $0x70] sm:$0xff]
        %v272 = vld [vmem:[%s224 + $0x78] sm:$0xff]
        %v273 = vld [vmem:[%s224 + $0x80] sm:$0xff]
        %v274 = vld [vmem:[%s224 + $0x88] sm:$0xff]
        %v275 = vld [vmem:[%s224 + $0x90] sm:$0xff]
        %v276 = vld [vmem:[%s224 + $0x98] sm:$0xff]
        %v277 = vld [vmem:[%s224 + $0xa0] sm:$0xff]
        %v278 = vld [vmem:[%s224 + $0xa8] sm:$0xff]
        %v279 = vld [vmem:[%s224 + $0xb0] sm:$0xff]
        %v280 = vld [vmem:[%s224 + $0xb8] sm:$0xff]
        %v281 = vld [vmem:[%s224 + $0xc0] sm:$0xff]
        %v282 = vld [vmem:[%s224 + $0xc8] sm:$0xff]
        %v283 = vld [vmem:[%s224 + $0xd0] sm:$0xff]
        %v284 = vld [vmem:[%s224 + $0xd8] sm:$0xff]
        %v285 = vld [vmem:[%s224 + $0xe0] sm:$0xff]
        %v286 = vld [vmem:[%s224 + $0xe8] sm:$0xff]
        %v287 = vld [vmem:[%s224 + $0xf0] sm:$0xff]
        %v288 = vld [vmem:[%s224 + $0xf8] sm:$0xff]
        %v289 = vld [vmem:[%s254] sm:$0x1]
        %v291 = vlaneseq
        %v292 = vshrl.u32 %v291, 7
        %v293 = vsub.s32 0, %v292
        %v294 = vrot.slane %v289, %v293
        %296 = vmatprep.subr.mxu0 0.0
        %297 = vmatpush1.msra.mxu0 %v257
        %298 = vmatprep.subr.mxu0 0.0
        %299 = vmatpush1.msra.mxu0 %v258
        %300 = vmatprep.subr.mxu0 0.0
        %301 = vmatpush1.msra.mxu0 %v259
        %302 = vmatprep.subr.mxu0 0.0
        %303 = vmatpush1.msra.mxu0 %v260
        %304 = vmatprep.subr.mxu0 0.0
        %305 = vmatpush1.msra.mxu0 %v261
        %306 = vmatprep.subr.mxu0 0.0
        %307 = vmatpush1.msra.mxu0 %v262
        %308 = vmatprep.subr.mxu0 0.0
        %309 = vmatpush1.msra.mxu0 %v263
        %310 = vmatprep.subr.mxu0 0.0
        %311 = vmatpush1.msra.mxu0 %v264
        %312 = vmatprep.subr.mxu0 0.0
        %313 = vmatpush1.msra.mxu0 %v265
        %314 = vmatprep.subr.mxu0 0.0
        %315 = vmatpush1.msra.mxu0 %v266
        %316 = vmatprep.subr.mxu0 0.0
        %317 = vmatpush1.msra.mxu0 %v267
        %318 = vmatprep.subr.mxu0 0.0
        %319 = vmatpush1.msra.mxu0 %v268
        %320 = vmatprep.subr.mxu0 0.0
        %321 = vmatpush1.msra.mxu0 %v269
        %322 = vmatprep.subr.mxu0 0.0
        %323 = vmatpush1.msra.mxu0 %v270
        %324 = vmatprep.subr.mxu0 0.0
        %325 = vmatpush1.msra.mxu0 %v271
        %326 = vmatprep.subr.mxu0 0.0
        %327 = vmatpush1.msra.mxu0 %v272
        %328 = vmatprep.subr.mxu0 0.0
        %329 = vmatpush1.msra.mxu0 %v273
        %330 = vmatprep.subr.mxu0 0.0
        %331 = vmatpush1.msra.mxu0 %v274
        %332 = vmatprep.subr.mxu0 0.0
        %333 = vmatpush1.msra.mxu0 %v275
        %334 = vmatprep.subr.mxu0 0.0
        %335 = vmatpush1.msra.mxu0 %v276
        %336 = vmatprep.subr.mxu0 0.0
        %337 = vmatpush1.msra.mxu0 %v277
        %338 = vmatprep.subr.mxu0 0.0
        %339 = vmatpush1.msra.mxu0 %v278
        %340 = vmatprep.subr.mxu0 0.0
        %341 = vmatpush1.msra.mxu0 %v279
        %342 = vmatprep.subr.mxu0 0.0
        %343 = vmatpush1.msra.mxu0 %v280
        %344 = vmatprep.subr.mxu0 0.0
        %345 = vmatpush1.msra.mxu0 %v281
        %346 = vmatprep.subr.mxu0 0.0
        %347 = vmatpush1.msra.mxu0 %v282
        %348 = vmatprep.subr.mxu0 0.0
        %349 = vmatpush1.msra.mxu0 %v283
        %350 = vmatprep.subr.mxu0 0.0
        %351 = vmatpush1.msra.mxu0 %v284
        %352 = vmatprep.subr.mxu0 0.0
        %353 = vmatpush1.msra.mxu0 %v285
        %354 = vmatprep.subr.mxu0 0.0
        %355 = vmatpush1.msra.mxu0 %v286
        %356 = vmatprep.subr.mxu0 0.0
        %357 = vmatpush1.msra.mxu0 %v287
        %358 = vmatprep.subr.mxu0 0.0
        %359 = vmatpush1.msra.mxu0 %v288
        %360 = vmatprep.mubr.f32.mxu0 %v256
        %361 = vmatmul.mubr.f32.gmra.mrb[0].mxu0 %v255
        %v362 = vpop.f32.mrb[0].mxu0
        %v363 = vadd.f32 %v294, %v362
        %v364 = vpop.f32.mrb[0].mxu0
        %365 = vdwg.mxu0
        %v366 = vtanh.pop %v363
        %367 = vst [vmem:[%s249] sm:$0xff] %v366
        %s368 = sand.u32 %s132, 1
        %s369 = scalar_lea.sflag [#allocation4], %s368
        %s370 = sand.u32 %s132, 1
        %s371 = smul.addr %s370, 8
        %s372 = scalar_lea.vmem [#allocation7], %s371
        // Predicated region
        $region41: #{tpu_custom_call.1} parent=31 // pred_check
          %p373 = pneg %p142
        $region42: #{tpu_custom_call.1} parent=31 // pred_check_branch
          %375 = sbr.rel (%p373) target = $region44
        $region43: #{tpu_custom_call.1} parent=31 // pred_region
          %s377 = ssub.s32 128, 128
          %378 = vsyncadd %s369, %s377
          %s379 = smul.addr %s26, 2
          %s380 = sadd.s32 %s27, %s379
          %s381 = smul.addr %s380, 128
          %s382 = scalar_lea.hbm %s3, %s381
          %s384 = sshll.u32 %s372, 4
          %s385 = int_to_ptr.vmem [resolvable:$true] %s384
          %387 = dma.vmem_to_hbm [thread:$0]  %s385, 128, %s382, %s369
        $region44: #{tpu_custom_call.1} parent=31 // pred_fallthru
          _
      $region32: #{tpu_custom_call.1} parent=5 // pred_fallthru
        _
      %p388 = scmp.le.s32.totalorder 2, %s16
      // Predicated region
      $region45: #{tpu_custom_call.1} parent=5 // pred_check
        %p389 = pneg %p388
      $region46: #{tpu_custom_call.1} parent=5 // pred_check_branch
        %391 = sbr.rel (%p389) target = $region48
      $region47: #{tpu_custom_call.1} parent=5 // pred_region
        %s392 = ssub.s32 %s16, 2
        // Predicated region
        $region49: #{tpu_custom_call.1} parent=47 // pred_check
          %p393 = pneg %p148
        $region50: #{tpu_custom_call.1} parent=47 // pred_check_branch
          %395 = sbr.rel (%p393) target = $region52
        $region51: #{tpu_custom_call.1} parent=47 // pred_region
          %s396 = sand.u32 %s133, 1
          %s397 = scalar_lea.sflag [#allocation4], %s396
          %s398 = sand.u32 %s133, 1
          %s399 = smul.addr %s398, 8
          %s400 = scalar_lea.vmem [#allocation7], %s399
          %401 = dma.done %s397, 128
        $region52: #{tpu_custom_call.1} parent=47 // pred_fallthru
          _
      $region48: #{tpu_custom_call.1} parent=5 // pred_fallthru
        _
    $region6: #{tpu_custom_call.1} parent=1 // loop_footer
      %s20 = sadd.s32 1, %s16
    $region7: #{tpu_custom_call.1} parent=1 // loop_footer_branch
      %15 = sbr.rel target = $region3
    $region8: #{tpu_custom_call.1} parent=1 // loop_exit
      _
    %402 = vsyncpa [#allocation3], 1
    %s403 = scalar_lea.sflag [#allocation3], 1
    %404 = vsyncpa %s403, 1
    %405 = vsyncpa [#allocation6], 1
    %s406 = scalar_lea.sflag [#allocation6], 1
    %407 = vsyncpa %s406, 1
    %408 = vsyncpa [#allocation4], 1
    %s409 = scalar_lea.sflag [#allocation4], 1
    %410 = vsyncpa %s409, 1

</llo_original>
